<compile_context>
chip_gen: v5e
topology: v5e:2x2
jax: 0.10.0
libtpu: 0.0.40
codegen_flags: <defaults>
</compile_context>

<pallas_src>
import jax
import jax.numpy as jnp
from jax.experimental import pallas as pl
from jax.experimental.pallas import tpu as pltpu


def _round_up(x, m):
    return (x + m - 1) // m * m


def _cdiv(a, b):
    return -(-a // b)


def _vmem_budget_bytes():
    """~75% of physical VMEM (v5e/v6e: 128 MiB -> 96; v7x: 64 MiB -> 48)."""
    try:
        phys = int(pltpu.get_tpu_info().vmem_capacity_bytes)
    except Exception:
        phys = 64 * 1024 * 1024  # conservative fallback
    return (phys * 3) // 4


def gated_pool_kernel(bmap_ref, h_ref, w1_ref, b1_ref, w2_ref, b2_ref, out_ref):
    """Gate MLP + per-tile global_add_pool, accumulated into a VMEM-resident
    per-partial output block [M_pad, H_pad] (f32).

    The message transform (pooled @ Wm) is applied OUTSIDE the kernel (exact
    algebraic reorder), so Wm never occupies VMEM.
    """
    step = pl.program_id(1)  # atom-tile axis ("arbitrary" / reduction)

    @pl.when(step == 0)
    def _():
        out_ref[...] = jnp.zeros_like(out_ref)

    h = h_ref[...]                                              # [tile_n, H_pad] f32

    # ---- Gate MLP: Linear(H, H//2) -> ReLU -> Linear(H//2, 1) -> sigmoid ----
    # bf16 MXU operands, f32 accumulation.
    g1 = jnp.dot(h.astype(jnp.bfloat16), w1_ref[...],
                 preferred_element_type=jnp.float32) + b1_ref[...]
    g1 = jnp.maximum(g1, 0.0)                                   # [tile_n, H2_pad]
    # Width-1 output matmul wastes MXU columns; VPU multiply + lane reduce instead.
    g2 = jnp.sum(g1 * w2_ref[...], axis=-1, keepdims=True) + b2_ref[0, 0]
    alpha = jax.nn.sigmoid(g2)                                  # [tile_n, 1] f32

    weighted = (alpha * h).astype(jnp.bfloat16)                 # [tile_n, H_pad]

    # ---- global_add_pool for this tile: one-hot matmul on the MXU (bf16 exact).
    # Padding rows carry the sentinel batch id == m_pad, so they never match.
    m_pad = out_ref.shape[0]
    tile_n = h.shape[0]
    mol_ids = jax.lax.broadcasted_iota(jnp.int32, (m_pad, tile_n), 0)
    onehot = (mol_ids == bmap_ref[...]).astype(jnp.bfloat16)    # [M_pad, tile_n]
    out_ref[...] += jnp.dot(onehot, weighted, preferred_element_type=jnp.float32)


def prepare_params(params):
    """One-time weight padding / casting (hoisted out of the per-call hot path)."""
    hidden, h2 = params["w1"].shape
    h_pad = _round_up(hidden, 128)
    h2_pad = _round_up(h2, 128)
    w1_p = jnp.zeros((h_pad, h2_pad), jnp.bfloat16).at[:hidden, :h2].set(
        params["w1"].astype(jnp.bfloat16))
    b1_p = jnp.zeros((1, h2_pad), jnp.float32).at[:, :h2].set(
        params["b1"].astype(jnp.float32))
    w2_p = jnp.zeros((1, h2_pad), jnp.float32).at[:, :h2].set(
        params["w2"].reshape(1, h2).astype(jnp.float32))
    b2_p = params["b2"].reshape(1, 1).astype(jnp.float32)
    return dict(w1_p=w1_p, b1_p=b1_p, w2_p=w2_p, b2_p=b2_p,
                wm=params["wm"].astype(jnp.float32),   # used outside the kernel (XLA)
                hidden=hidden, h2=h2, h_pad=h_pad, h2_pad=h2_pad)


def gated_skip_block(h_atoms, batch_map, prep, num_mols, *, tile_n=None):
    """Pallas forward pass equivalent to GatedSkipBlock.forward."""
    n, hidden = h_atoms.shape
    assert hidden == prep["hidden"]
    h_pad, h2_pad = prep["h_pad"], prep["h2_pad"]
    m_pad = _round_up(max(num_mols, 1), 8)
    n8 = _round_up(n, 8)

    vmem_budget = _vmem_budget_bytes()

    def vmem_need(t):
        return (
            2 * t * h_pad * 4          # h tile (f32, double buffered)
            + 2 * t * 4                # batch-id tile (double buffered)
            + h_pad * h2_pad * 2       # W1 (bf16, resident)
            + 2 * h2_pad * 4           # b1 + w2 rows (resident)
            + 2 * m_pad * h_pad * 4    # out partial block
            + t * h2_pad * 4           # g1 intermediate
            + 2 * t * h_pad * 2        # bf16 copies of h / weighted
            + m_pad * t * 2            # one-hot tile (bf16)
        )

    def _fit_tile(t):
        t = max(8, _round_up(t, 8))
        if t >= n8 or n8 <= 128:
            return n8                  # single tile: full-dim block is always legal
        return max(128, (t // 128) * 128)   # multi-tile: keep 128-lane alignment

    if tile_n is None:
        tile_n = 1024 if vmem_budget > 64 * 1024 * 1024 else 512
    tile_n = _fit_tile(tile_n)
    # Back off tile_n (graceful) instead of clamping vmem_limit below true need.
    while tile_n > 128 and 2 * vmem_need(tile_n) > vmem_budget:
        tile_n = _fit_tile(tile_n // 2)
    vmem_limit = int(min(max(2 * vmem_need(tile_n), 32 * 1024 * 1024), vmem_budget))

    total_tiles = _cdiv(n, tile_n)
    num_partials = 2 if total_tiles >= 2 else 1   # both TCs on v7x; harmless elsewhere
    tpp = _cdiv(total_tiles, num_partials)        # tiles per partial
    n_pad = num_partials * tpp * tile_n

    # Stream h unpadded whenever possible (hidden % 128 == 0 and N matches the
    # tile grid) -> no extra HBM round-trip on the dominant input.
    if n_pad != n or h_pad != hidden:
        h_in = jnp.zeros((n_pad, h_pad), jnp.float32).at[:n, :hidden].set(
            h_atoms.astype(jnp.float32))
    else:
        h_in = h_atoms.astype(jnp.float32)
    # Sentinel batch id == m_pad for padding rows -> never matches a molecule.
    bmap_in = (jnp.full((1, n_pad), m_pad, jnp.int32)
               .at[0, :n].set(batch_map.astype(jnp.int32)))

    flops = 2 * n_pad * h_pad * h2_pad + 2 * n_pad * m_pad * h_pad
    bytes_accessed = int(
        h_in.size * 4 + bmap_in.size * 4
        + prep["w1_p"].size * 2 + prep["b1_p"].size * 4 + prep["w2_p"].size * 4 + 4
        + num_partials * m_pad * h_pad * 4)

    partials = pl.pallas_call(
        gated_pool_kernel,
        out_shape=jax.ShapeDtypeStruct((num_partials, m_pad, h_pad), jnp.float32),
        grid_spec=pltpu.PrefetchScalarGridSpec(
            num_scalar_prefetch=0,
            grid=(num_partials, tpp),
            in_specs=[
                pl.BlockSpec((1, tile_n), lambda c, i: (0, c * tpp + i)),      # batch ids
                pl.BlockSpec((tile_n, h_pad), lambda c, i: (c * tpp + i, 0)),  # h tile
                pl.BlockSpec((h_pad, h2_pad), lambda c, i: (0, 0)),            # W1 (bf16)
                pl.BlockSpec((1, h2_pad), lambda c, i: (0, 0)),                # b1
                pl.BlockSpec((1, h2_pad), lambda c, i: (0, 0)),                # w2 row
                pl.BlockSpec(memory_space=pltpu.MemorySpace.SMEM),             # b2 scalar
            ],
            out_specs=pl.BlockSpec((None, m_pad, h_pad), lambda c, i: (c, 0, 0)),
        ),
        compiler_params=pltpu.CompilerParams(
            dimension_semantics=("parallel", "arbitrary"),
            vmem_limit_bytes=vmem_limit,
        ),
        cost_estimate=pl.CostEstimate(
            flops=flops, transcendentals=n_pad, bytes_accessed=bytes_accessed),
    )(bmap_in, h_in, prep["w1_p"], prep["b1_p"], prep["w2_p"], prep["b2_p"])

    # Cross-partial reduce + message transform OUTSIDE the kernel: tiny
    # [M, H] x [H, H] matmul in f32; keeps Wm out of VMEM entirely.
    pooled = partials.sum(axis=0)[:num_mols, :hidden]
    return pooled @ prep["wm"]


def init_params(key, hidden):
    """Deterministic synthetic parameters matching the PyTorch module's shapes.
    Weights are stored pre-transposed as [in, out]."""
    h2 = hidden // 2
    k1, k2, k3, k4, k5 = jax.random.split(key, 5)
    return {
        # gate_nn[0]: Linear(hidden, hidden//2)
        "w1": jax.random.normal(k1, (hidden, h2), jnp.float32) * (1.0 / hidden) ** 0.5,
        "b1": jax.random.normal(k2, (1, h2), jnp.float32) * 0.01,
        # gate_nn[2]: Linear(hidden//2, 1)
        "w2": jax.random.normal(k3, (h2, 1), jnp.float32) * (1.0 / h2) ** 0.5,
        "b2": jax.random.normal(k4, (1, 1), jnp.float32) * 0.01,
        # message_transform: Linear(hidden, hidden, bias=False)
        "wm": jax.random.normal(k5, (hidden, hidden), jnp.float32) * (1.0 / hidden) ** 0.5,
    }


def reference(h_atoms, batch_map, params, num_mols):
    """Pure-JAX f32 reference for correctness check."""
    g1 = jnp.maximum(h_atoms @ params["w1"] + params["b1"], 0.0)
    alpha = jax.nn.sigmoid(g1 @ params["w2"] + params["b2"])
    msgs = h_atoms @ params["wm"]
    gated = alpha * msgs
    return jax.ops.segment_sum(gated, batch_map, num_segments=num_mols)


if __name__ == "__main__":
    key = jax.random.PRNGKey(0)
    k_h, k_p = jax.random.split(key)

    N, HIDDEN, NUM_MOLS = 8, 32, 2          # 8 atoms, hidden=32, 2 molecules
    h_atoms = jax.random.normal(k_h, (N, HIDDEN), jnp.float32)
    batch_map = jnp.array([0, 0, 0, 0, 1, 1, 1, 1], dtype=jnp.int32)
    params = init_params(k_p, HIDDEN)

    prep = prepare_params(params)           # one-time weight padding (hoisted)
    out = gated_skip_block(h_atoms, batch_map, prep, NUM_MOLS)
    out = jax.block_until_ready(out)

    ref = reference(h_atoms, batch_map, params, NUM_MOLS)
    assert out.shape == (NUM_MOLS, HIDDEN)
    # bf16 MXU operands (f32 accumulation) -> loosened tolerance vs f32 reference.
    assert jnp.allclose(out, ref, atol=5e-2, rtol=5e-2), "mismatch vs reference"

    print("KERNEL_OK")
</pallas_src>

<mosaic_0001>
module attributes {stable_mosaic.version = 11 : i64} {
  func.func @gated_pool_kernel(%arg0: i32, %arg1: i32, %arg2: memref<1x8xi32, #tpu.memory_space<vmem>>, %arg3: memref<8x128xf32, #tpu.memory_space<vmem>>, %arg4: memref<128x128xbf16, #tpu.memory_space<vmem>>, %arg5: memref<1x128xf32, #tpu.memory_space<vmem>>, %arg6: memref<1x128xf32, #tpu.memory_space<vmem>>, %arg7: memref<1x1xf32, #tpu.memory_space<smem>>, %arg8: memref<1x8x128xf32, #tpu.memory_space<vmem>>) attributes {dimension_semantics = [#tpu.dimension_semantics<parallel>, #tpu.dimension_semantics<arbitrary>], iteration_bounds = array<i64: 1, 1>, scalar_prefetch = 0 : i64, scratch_operands = 0 : i64, tpu.core_type = #tpu.core_type<tc>, window_params = [{transform_indices = @transform_0, window_bounds = array<i64: 1, 8>}, {transform_indices = @transform_1, window_bounds = array<i64: 8, 128>}, {pipeline_mode = #tpu.pipeline_mode<synchronous>, transform_indices = @transform_2, window_bounds = array<i64: 128, 128>}, {pipeline_mode = #tpu.pipeline_mode<synchronous>, transform_indices = @transform_3, window_bounds = array<i64: 1, 128>}, {pipeline_mode = #tpu.pipeline_mode<synchronous>, transform_indices = @transform_4, window_bounds = array<i64: 1, 128>}, {transform_indices = @transform_5, window_bounds = array<i64: 1, 1>}, {transform_indices = @transform_6, window_bounds = array<i64: 1, 8, 128>}]} {
    %c0_i32 = arith.constant 0 : i32
    %0 = arith.cmpi eq, %arg1, %c0_i32 : i32
    %1 = arith.extui %0 : i1 to i32
    %c0_i32_0 = arith.constant 0 : i32
    %2 = arith.cmpi ne, %1, %c0_i32_0 : i32
    scf.if %2 {
      %cst_22 = arith.constant 0.000000e+00 : f32
      %42 = vector.broadcast %cst_22 : f32 to vector<8x128xf32>
      %c0_23 = arith.constant 0 : index
      %c0_24 = arith.constant 0 : index
      %c0_25 = arith.constant 0 : index
      %43 = vector.load %arg8[%c0_23, %c0_24, %c0_25] : memref<1x8x128xf32, #tpu.memory_space<vmem>>, vector<1x8x128xf32>
      %44 = vector.shape_cast %43 : vector<1x8x128xf32> to vector<8x128xf32>
      %45 = vector.shape_cast %42 : vector<8x128xf32> to vector<1x8x128xf32>
      tpu.vector_store %arg8[%c0_23, %c0_24, %c0_25], %45 {strides = array<i32>} : memref<1x8x128xf32, #tpu.memory_space<vmem>>, vector<1x8x128xf32>,
    } else {
    }
    %c0 = arith.constant 0 : index
    %c0_1 = arith.constant 0 : index
    %3 = vector.load %arg3[%c0, %c0_1] : memref<8x128xf32, #tpu.memory_space<vmem>>, vector<8x128xf32>
    %4 = arith.truncf %3 : vector<8x128xf32> to vector<8x128xbf16>
    %c0_2 = arith.constant 0 : index
    %c0_3 = arith.constant 0 : index
    %5 = vector.load %arg4[%c0_2, %c0_3] : memref<128x128xbf16, #tpu.memory_space<vmem>>, vector<128x128xbf16>
    %cst = arith.constant dense<0.000000e+00> : vector<8x128xf32>
    %6 = tpu.matmul %4, %5, %cst {dimension_numbers = #tpu.dot_dimension_numbers<[1], [0], [0], [1], [0, 0, 1, 1], [], []>} : vector<8x128xbf16>, vector<128x128xbf16>, vector<8x128xf32> -> vector<8x128xf32>
    %c0_4 = arith.constant 0 : index
    %c0_5 = arith.constant 0 : index
    %7 = vector.load %arg5[%c0_4, %c0_5] : memref<1x128xf32, #tpu.memory_space<vmem>>, vector<1x128xf32>
    %8 = vector.broadcast %7 : vector<1x128xf32> to vector<8x128xf32>
    %9 = arith.addf %6, %8 : vector<8x128xf32>
    %cst_6 = arith.constant 0.000000e+00 : f32
    %10 = vector.broadcast %cst_6 : f32 to vector<8x128xf32>
    %11 = arith.maximumf %9, %10 : vector<8x128xf32>
    %c0_7 = arith.constant 0 : index
    %c0_8 = arith.constant 0 : index
    %12 = vector.load %arg6[%c0_7, %c0_8] : memref<1x128xf32, #tpu.memory_space<vmem>>, vector<1x128xf32>
    %13 = vector.broadcast %12 : vector<1x128xf32> to vector<8x128xf32>
    %14 = arith.mulf %11, %13 : vector<8x128xf32>
    %cst_9 = arith.constant dense<0.000000e+00> : vector<8xf32>
    %15 = vector.multi_reduction <add>, %14, %cst_9 [1] : vector<8x128xf32> to vector<8xf32>
    %16 = vector.shape_cast %15 : vector<8xf32> to vector<8x1xf32>
    %c0_10 = arith.constant 0 : index
    %c0_11 = arith.constant 0 : index
    %17 = memref.load %arg7[%c0_10, %c0_11] : memref<1x1xf32, #tpu.memory_space<smem>>
    %18 = vector.broadcast %17 : f32 to vector<8x1xf32>
    %19 = arith.addf %16, %18 : vector<8x1xf32>
    %20 = arith.negf %19 : vector<8x1xf32>
    %21 = math.exp %20 : vector<8x1xf32>
    %cst_12 = arith.constant 1.000000e+00 : f32
    %22 = vector.broadcast %cst_12 : f32 to vector<8x1xf32>
    %23 = arith.addf %22, %21 : vector<8x1xf32>
    %24 = arith.divf %22, %23 : vector<8x1xf32>
    %25 = vector.broadcast %24 : vector<8x1xf32> to vector<8x128xf32>
    %26 = arith.mulf %25, %3 : vector<8x128xf32>
    %27 = arith.truncf %26 : vector<8x128xf32> to vector<8x128xbf16>
    %28 = tpu.iota {dimensions = array<i32: 0>} : vector<8x8xi32>
    %c0_13 = arith.constant 0 : index
    %c0_14 = arith.constant 0 : index
    %29 = vector.load %arg2[%c0_13, %c0_14] : memref<1x8xi32, #tpu.memory_space<vmem>>, vector<1x8xi32>
    %30 = vector.broadcast %29 : vector<1x8xi32> to vector<8x8xi32>
    %31 = arith.cmpi eq, %28, %30 : vector<8x8xi32>
    %32 = arith.extui %31 : vector<8x8xi1> to vector<8x8xi32>
    %33 = arith.sitofp %32 : vector<8x8xi32> to vector<8x8xf32>
    %34 = arith.truncf %33 : vector<8x8xf32> to vector<8x8xbf16>
    %c0_15 = arith.constant 0 : index
    %c0_16 = arith.constant 0 : index
    %c0_17 = arith.constant 0 : index
    %35 = vector.load %arg8[%c0_15, %c0_16, %c0_17] : memref<1x8x128xf32, #tpu.memory_space<vmem>>, vector<1x8x128xf32>
    %36 = vector.shape_cast %35 : vector<1x8x128xf32> to vector<8x128xf32>
    %cst_18 = arith.constant dense<0.000000e+00> : vector<8x128xf32>
    %37 = tpu.matmul %34, %27, %cst_18 {dimension_numbers = #tpu.dot_dimension_numbers<[1], [0], [0], [1], [0, 0, 1, 1], [], []>} : vector<8x8xbf16>, vector<8x128xbf16>, vector<8x128xf32> -> vector<8x128xf32>
    %38 = arith.addf %36, %37 : vector<8x128xf32>
    %c0_19 = arith.constant 0 : index
    %c0_20 = arith.constant 0 : index
    %c0_21 = arith.constant 0 : index
    %39 = vector.load %arg8[%c0_19, %c0_20, %c0_21] : memref<1x8x128xf32, #tpu.memory_space<vmem>>, vector<1x8x128xf32>
    %40 = vector.shape_cast %39 : vector<1x8x128xf32> to vector<8x128xf32>
    %41 = vector.shape_cast %38 : vector<8x128xf32> to vector<1x8x128xf32>
    tpu.vector_store %arg8[%c0_19, %c0_20, %c0_21], %41 {strides = array<i32>} : memref<1x8x128xf32, #tpu.memory_space<vmem>>, vector<1x8x128xf32>,
    return
  }
  func.func @transform_0(%arg0: i32, %arg1: i32) -> (i32, i32) {
    %c1_i32 = arith.constant 1 : i32
    %0 = arith.muli %arg0, %c1_i32 : i32
    %1 = arith.addi %0, %arg1 : i32
    %c0_i32 = arith.constant 0 : i32
    %c0_i32_0 = arith.constant 0 : i32
    return %c0_i32, %1 : i32, i32
  }
  func.func @transform_1(%arg0: i32, %arg1: i32) -> (i32, i32) {
    %c1_i32 = arith.constant 1 : i32
    %0 = arith.muli %arg0, %c1_i32 : i32
    %1 = arith.addi %0, %arg1 : i32
    %c0_i32 = arith.constant 0 : i32
    %c0_i32_0 = arith.constant 0 : i32
    return %1, %c0_i32 : i32, i32
  }
  func.func @transform_2(%arg0: i32, %arg1: i32) -> (i32, i32) {
    %c0_i32 = arith.constant 0 : i32
    %c0_i32_0 = arith.constant 0 : i32
    %c0_i32_1 = arith.constant 0 : i32
    return %c0_i32, %c0_i32_0 : i32, i32
  }
  func.func @transform_3(%arg0: i32, %arg1: i32) -> (i32, i32) {
    %c0_i32 = arith.constant 0 : i32
    %c0_i32_0 = arith.constant 0 : i32
    %c0_i32_1 = arith.constant 0 : i32
    return %c0_i32, %c0_i32_0 : i32, i32
  }
  func.func @transform_4(%arg0: i32, %arg1: i32) -> (i32, i32) {
    %c0_i32 = arith.constant 0 : i32
    %c0_i32_0 = arith.constant 0 : i32
    %c0_i32_1 = arith.constant 0 : i32
    return %c0_i32, %c0_i32_0 : i32, i32
  }
  func.func @transform_5(%arg0: i32, %arg1: i32) -> (i32, i32) {
    %c0_i32 = arith.constant 0 : i32
    %c0_i32_0 = arith.constant 0 : i32
    %c0_i32_1 = arith.constant 0 : i32
    return %c0_i32, %c0_i32_0 : i32, i32
  }
  func.func @transform_6(%arg0: i32, %arg1: i32) -> (i32, i32, i32) {
    %c0_i32 = arith.constant 0 : i32
    %c0_i32_0 = arith.constant 0 : i32
    %c0_i32_1 = arith.constant 0 : i32
    return %arg0, %c0_i32, %c0_i32_0 : i32, i32, i32
  }
}

</mosaic_0001>

<llo_original>
// kernel: tpu_custom_call.1
$region0: #{tpu_custom_call.1}
  #allocation0 [shape = 'u32[]', space=smem, size = 0x4, offset = 0x4, fixed_abs, tag = 'smem constant byte address 0x4 - core index']
  #allocation1 [shape = 'u32[72,128]{1,0:T(1,128)}', space=vmem, size = 0x9000, scoped, tag = 'internal scratch']
  #allocation2 [shape = 'f32[1,1]{1,0:T(1,128)S(6)}', space=smem, size = 0x200, scoped, tag = 'scoped memory for tpu_custom_call.1']
  %s0 = inlined_call_operand.vmem [shape: s32[1,8], index: 0, kind: input, shape index: {}]
  %s1 = inlined_call_operand.hbm [shape: f32[8,128], index: 1, kind: input, shape index: {}]
  %s2 = inlined_call_operand.hbm [shape: bf16[128,128], index: 2, kind: input, shape index: {}]
  %s3 = inlined_call_operand.vmem [shape: f32[1,128], index: 3, kind: input, shape index: {}]
  %s4 = inlined_call_operand.vmem [shape: f32[1,128], index: 4, kind: input, shape index: {}]
  %s5 = inlined_call_operand.<no memory space> [shape: f32[1,1], index: 5, kind: input, shape index: {}]
  %s6 = inlined_call_operand.hbm [shape: f32[1,8,128], index: 6, kind: output, shape index: {}]
  %s7 = sld [smem:[#allocation0]]
  $region46: #{tpu_custom_call.1} parent=0
    _
  %s9 = ssub.s32 1, %s7
  %s10 = scalar_select 0, %s9, %s7
  %11 = sst [smem:[#allocation2]] %s5
  $region1: #{tpu_custom_call.1} parent=0
    #allocation3 [shape = 'u8[4096]{0}', space=vmem, size = 0x1000, scoped, tag = 'input window, operand 1, single buffered']
    #allocation4 [shape = 's32[1]{0}', space=sflag, size = 0x4, scoped, tag = 'scoped memory for tpu_custom_call.1']
    #allocation5 [shape = 's32[1]{0}', space=sflag, size = 0x4, scoped, tag = 'scoped memory for tpu_custom_call.1']
    #allocation6 [shape = 'u8[32768]{0}', space=vmem, size = 0x8000, scoped, tag = 'input window, operand 2, single buffered']
    #allocation7 [shape = 's32[1]{0}', space=sflag, size = 0x4, scoped, tag = 'scoped memory for tpu_custom_call.1']
    #allocation8 [shape = 'u8[4096]{0}', space=vmem, size = 0x1000, scoped, tag = 'output window, operand 0, single buffered']
    %12 = vsyncpa [#allocation4], 0
    %13 = vsyncpa [#allocation7], 0
    %14 = vsyncpa [#allocation5], 0
    // Predicated region
    $region2: #{tpu_custom_call.1} parent=1 // pred_check
      _
    $region3: #{tpu_custom_call.1} parent=1 // pred_check_branch
      %16 = sbr.rel (0) target = $region5
    $region4: #{tpu_custom_call.1} parent=1 // pred_region
      %s17 = sadd.s32 0, 0
      %p18 = scmp.lt.s32.totalorder %s17, 0
      %s19 = scalar_select %p18, %s17, 0
      %s20 = scalar_lea.vmem %s0, %s19
      %s21 = sadd.s32 0, 0
    $region5: #{tpu_custom_call.1} parent=1 // pred_fallthru
      _
    // Predicated region
    $region6: #{tpu_custom_call.1} parent=1 // pred_check
      _
    $region7: #{tpu_custom_call.1} parent=1 // pred_check_branch
      %23 = sbr.rel (0) target = $region9
    $region8: #{tpu_custom_call.1} parent=1 // pred_region
      %s24 = sadd.s32 0, 0
      %26 = vsyncadd [#allocation4], 0
      %s27 = smul.addr %s24, 8
      %s28 = scalar_lea.hbm %s1, %s27
      %s30 = sshll.u32 %s28, 4
      %s31 = int_to_ptr.hbm [resolvable:$true] %s30
      %s32 = sshll.u32 [#allocation3], 4
      %s33 = int_to_ptr.vmem [resolvable:$true] %s32
      %35 = dma.hbm_to_vmem [thread:$0]  %s31, 128, %s33, [#allocation4]
    $region9: #{tpu_custom_call.1} parent=1 // pred_fallthru
      _
    // Predicated region
    $region10: #{tpu_custom_call.1} parent=1 // pred_check
      _
    $region11: #{tpu_custom_call.1} parent=1 // pred_check_branch
      %37 = sbr.rel (0) target = $region13
    $region12: #{tpu_custom_call.1} parent=1 // pred_region
      %39 = vsyncadd [#allocation7], 0
      %s40 = sshll.u32 %s2, 4
      %s41 = int_to_ptr.hbm [resolvable:$true] %s40
      %s42 = sshll.u32 [#allocation6], 4
      %s43 = int_to_ptr.vmem [resolvable:$true] %s42
      %48 = dma.hbm_to_vmem [thread:$0]  %s41, 1024, %s43, [#allocation7], 64, 64, 4
    $region13: #{tpu_custom_call.1} parent=1 // pred_fallthru
      _
    // Predicated region
    $region14: #{tpu_custom_call.1} parent=1 // pred_check
      _
    $region15: #{tpu_custom_call.1} parent=1 // pred_check_branch
      %50 = sbr.rel (0) target = $region17
    $region16: #{tpu_custom_call.1} parent=1 // pred_region
      _
    $region17: #{tpu_custom_call.1} parent=1 // pred_fallthru
      _
    // Predicated region
    $region18: #{tpu_custom_call.1} parent=1 // pred_check
      _
    $region19: #{tpu_custom_call.1} parent=1 // pred_check_branch
      %52 = sbr.rel (0) target = $region21
    $region20: #{tpu_custom_call.1} parent=1 // pred_region
      _
    $region21: #{tpu_custom_call.1} parent=1 // pred_fallthru
      _
    // Predicated region
    $region22: #{tpu_custom_call.1} parent=1 // pred_check
      _
    $region23: #{tpu_custom_call.1} parent=1 // pred_check_branch
      %54 = sbr.rel (0) target = $region25
    $region24: #{tpu_custom_call.1} parent=1 // pred_region
      _
    $region25: #{tpu_custom_call.1} parent=1 // pred_fallthru
      _
    // Predicated region
    $region26: #{tpu_custom_call.1} parent=1 // pred_check
      _
    $region27: #{tpu_custom_call.1} parent=1 // pred_check_branch
      %56 = sbr.rel (0) target = $region29
    $region28: #{tpu_custom_call.1} parent=1 // pred_region
      %58 = dma.done [#allocation4], 128
    $region29: #{tpu_custom_call.1} parent=1 // pred_fallthru
      _
    // Predicated region
    $region30: #{tpu_custom_call.1} parent=1 // pred_check
      _
    $region31: #{tpu_custom_call.1} parent=1 // pred_check_branch
      %60 = sbr.rel (0) target = $region33
    $region32: #{tpu_custom_call.1} parent=1 // pred_region
      %62 = dma.done [#allocation7], 1024
    $region33: #{tpu_custom_call.1} parent=1 // pred_fallthru
      _
    %s63 = sadd.s32 0, 0
    %p64 = scmp.lt.s32.totalorder %s63, 0
    %s65 = scalar_select %p64, %s63, 0
    %s66 = scalar_lea.vmem %s0, %s65
    %s67 = sadd.s32 0, 0
    %p68 = scmp.lt.s32.totalorder %s67, 0
    %s69 = scalar_select %p68, %s67, 0
    %s70 = scalar_lea.vmem %s0, %s69
    %s71 = sadd.s32 0, 0
    %s72 = sadd.s32 0, 0
    %p74 = scmp.eq.s32.totalorder 0, 0
    // Predicated region
    $region34: #{tpu_custom_call.1} parent=1 // pred_check
      %p75 = pneg %p74
    $region35: #{tpu_custom_call.1} parent=1 // pred_check_branch
      %77 = sbr.rel (%p75) target = $region37
    $region36: #{tpu_custom_call.1} parent=1 // pred_region
      %78 = vst [vmem:[#allocation8] sm:$0xff] 0.0
    $region37: #{tpu_custom_call.1} parent=1 // pred_fallthru
      _
    %v79 = vld [vmem:[#allocation3] sm:$0xff]
    %v80 = vpack.c.bf16 %v79, %v79
    %v81 = vld [vmem:[#allocation6] sm:$0xf]
    %v82 = vld [vmem:[#allocation6 + $0x4] sm:$0xf]
    %v83 = vld [vmem:[#allocation6 + $0x8] sm:$0xf]
    %v84 = vld [vmem:[#allocation6 + $0xc] sm:$0xf]
    %v85 = vld [vmem:[#allocation6 + $0x10] sm:$0xf]
    %v86 = vld [vmem:[#allocation6 + $0x14] sm:$0xf]
    %v87 = vld [vmem:[#allocation6 + $0x18] sm:$0xf]
    %v88 = vld [vmem:[#allocation6 + $0x1c] sm:$0xf]
    %v89 = vld [vmem:[#allocation6 + $0x20] sm:$0xf]
    %v90 = vld [vmem:[#allocation6 + $0x24] sm:$0xf]
    %v91 = vld [vmem:[#allocation6 + $0x28] sm:$0xf]
    %v92 = vld [vmem:[#allocation6 + $0x2c] sm:$0xf]
    %v93 = vld [vmem:[#allocation6 + $0x30] sm:$0xf]
    %v94 = vld [vmem:[#allocation6 + $0x34] sm:$0xf]
    %v95 = vld [vmem:[#allocation6 + $0x38] sm:$0xf]
    %v96 = vld [vmem:[#allocation6 + $0x3c] sm:$0xf]
    %v97 = vld [vmem:[%s3] sm:$0x1]
    %v99 = vperm.slane %v97, 0
    %v117 = vunpack.c.l.b16 %v81
    %v118 = vunpack.c.l.b16 %v82
    %v119 = vunpack.c.l.b16 %v83
    %v120 = vunpack.c.l.b16 %v84
    %v121 = vunpack.c.l.b16 %v85
    %v122 = vunpack.c.l.b16 %v86
    %v123 = vunpack.c.l.b16 %v87
    %v124 = vunpack.c.l.b16 %v88
    %v125 = vunpack.c.l.b16 %v89
    %v126 = vunpack.c.l.b16 %v90
    %v127 = vunpack.c.l.b16 %v91
    %v128 = vunpack.c.l.b16 %v92
    %v129 = vunpack.c.l.b16 %v93
    %v130 = vunpack.c.l.b16 %v94
    %v131 = vunpack.c.l.b16 %v95
    %v132 = vunpack.c.l.b16 %v96
    %v133 = vpack.c.b16 %v118, %v117
    %v134 = vpack.c.b16 %v120, %v119
    %v135 = vpack.c.b16 %v122, %v121
    %v136 = vpack.c.b16 %v124, %v123
    %v137 = vpack.c.b16 %v126, %v125
    %v138 = vpack.c.b16 %v128, %v127
    %v139 = vpack.c.b16 %v130, %v129
    %v140 = vpack.c.b16 %v132, %v131
    %149 = vmatpush.bf16.msra.mxu0 %v140
    %150 = vmatpush.bf16.msra.mxu0 %v139
    %151 = vmatpush.bf16.msra.mxu0 %v138
    %152 = vmatpush.bf16.msra.mxu0 %v137
    %153 = vmatpush.bf16.msra.mxu0 %v136
    %154 = vmatpush.bf16.msra.mxu0 %v135
    %155 = vmatpush.bf16.msra.mxu0 %v134
    %156 = vmatpush.bf16.msra.mxu0 %v133
    %157 = vmatmul.bf16.gmra.mxu0 %v80
    %v158 = vpop.f32.mrf.mxu0
    %v159 = vadd.f32 %v99, %v158
    %v160 = vpop.f32.mrf.mxu0
    %161 = vdwg.mxu0
    %v162 = vmax.f32 %v159, 0.0
    %v163 = vld [vmem:[%s4] sm:$0x1]
    %v165 = vperm.slane %v163, 0
    %v167 = vmul.f32 %v162, %v165
    %168 = vadd.xlane.f32.xlu0 %v167
    %v169 = vpop.xlane.xlu0 %168
    %s170 = sld [smem:[#allocation2]]
    %v171 = vstv %s170
    %v172 = vadd.f32 %v169, %v171
    %v173 = vxor.u32 %v172, 2147483648
    %v174 = vmul.f32 %v173, 1.442695
    %v175 = vpow.pop %v174
    %v176 = vadd.f32 %v175, 1.0
    %v177 = vrcp.pop %v176
    %v178 = vmul.f32 %v176, %v177
    %v179 = vsub.f32 1.0, %v178
    %v180 = vmul.f32 %v177, %v179
    %v181 = vadd.f32 %v177, %v180
    %vm182 = vweird.f32 %v176
    %vm183 = vweird.f32 %v177
    %vm184 = vmor %vm182, %vm183
    %v185 = vsel %vm184, %v177, %v181
    %v186 = vand.u32 2147483647, %v176
    %vm187 = vcmp.eq.f32.partialorder %v186, 8.507059e+37
    %v188 = vand.u32 %v176, 2147483648
    %v189 = vor.u32 1.1754944e-38, %v188
    %v190 = vsel %vm187, %v189, %v185
    %v191 = vmul.f32 1.0, %v190
    %v192 = vmul.f32 %v191, %v79
    %v193 = vpack.c.bf16 %v192, %v192
    %v194 = vlaneseq
    %v195 = vshrl.u32 %v194, 7
    %v196 = vld [vmem:[%s70] sm:$0x1]
    %v197 = vperm.slane %v196, 0
    %vm198 = vcmp.eq.s32.totalorder %v195, %v197
    %v199 = vsel %vm198, 1, 0
    %v200 = vcvt.s32.f32 %v199
    %v201 = vpack.c.bf16 %v200, %v200
    %v202 = vld [vmem:[#allocation8] sm:$0xff]
    %vm203 = vcmask 64512
    %v205 = vsel %vm203, %v201, 0
    %vm207 = vcmask 1043456
    %v209 = vsel %vm207, %v193, 0
    %211 = vmatpush.bf16.msra.mxu0 0
    %212 = vmatpush.bf16.msra.mxu0 0
    %213 = vmatpush.bf16.msra.mxu0 0
    %214 = vmatpush.bf16.msra.mxu0 0
    %215 = vmatpush.bf16.msra.mxu0 0
    %216 = vmatpush.bf16.msra.mxu0 0
    %217 = vmatpush.bf16.msra.mxu0 0
    %218 = vmatpush.bf16.msra.mxu0 %v209
    %219 = vmatmul.bf16.gmra.mxu0 %v205
    %v220 = vpop.f32.mrf.mxu0
    %v221 = vadd.f32 0.0, %v220
    %v222 = vpop.f32.mrf.mxu0
    %223 = vdwg.mxu0
    %v224 = vadd.f32 %v202, %v221
    %225 = vst [vmem:[#allocation8] sm:$0xff] %v224
    // Predicated region
    $region38: #{tpu_custom_call.1} parent=1 // pred_check
      _
    $region39: #{tpu_custom_call.1} parent=1 // pred_check_branch
      %227 = sbr.rel (0) target = $region41
    $region40: #{tpu_custom_call.1} parent=1 // pred_region
      %229 = vsyncadd [#allocation5], 0
      %s231 = sshll.u32 [#allocation8], 4
      %s232 = int_to_ptr.vmem [resolvable:$true] %s231
      %s233 = sshll.u32 %s6, 4
      %s234 = int_to_ptr.hbm [resolvable:$true] %s233
      %236 = dma.vmem_to_hbm [thread:$0]  %s232, 128, %s234, [#allocation5]
    $region41: #{tpu_custom_call.1} parent=1 // pred_fallthru
      _
    // Predicated region
    $region42: #{tpu_custom_call.1} parent=1 // pred_check
      _
    $region43: #{tpu_custom_call.1} parent=1 // pred_check_branch
      %238 = sbr.rel (0) target = $region45
    $region44: #{tpu_custom_call.1} parent=1 // pred_region
      %240 = dma.done [#allocation5], 128
    $region45: #{tpu_custom_call.1} parent=1 // pred_fallthru
      _
    %241 = vsyncpa [#allocation4], 1
    %242 = vsyncpa [#allocation7], 1
    %243 = vsyncpa [#allocation5], 1

</llo_original>
